<compile_context>
chip_gen: v7x
topology: tpu7x:2x2x1
jax: 0.10.0
libtpu: 0.0.40
codegen_flags: <defaults>
</compile_context>

<pallas_src>
import math
import numpy as np

import jax
import jax.numpy as jnp
from jax.experimental import pallas as pl
from jax.experimental.pallas import tpu as pltpu

KH = KW = 9  # the module forces kernel_sizes = [9]


def _get_split_sizes(channels, num_kernels, p):
    """Faithful port of the PyTorch helper (trivial for num_kernels == 1)."""
    sizes = []
    for i in range(1, num_kernels + 1):
        progress = min(float(i) / num_kernels, 1)
        remaining_progress = (1.0 - progress) ** p
        sizes.append(int(channels - channels * remaining_progress) - int(np.sum(sizes)))
    sizes[0] += channels - int(np.sum(sizes))
    return sizes


def _make_conv_banded_kernel(pad_top):
    """Per-sample kernel body. Static shapes/pads are closed over."""

    def kernel(x_ref, band_ref, bias_ref, o_ref, xpad_ref):
        # x_ref:    (1, H, W*Cin)        unpadded input, NHWC flattened over (W, Cin)
        # band_ref: (KH, W*Cin, W*Cout)  banded (block-Toeplitz) weights (resident)
        # bias_ref: (1, W*Cout)          bias tiled over w
        # o_ref:    (1, H, W*Cout)
        # xpad_ref: VMEM scratch (Hp, W*Cin) -- fused height "same" padding
        _, H, WCin = x_ref.shape
        _, _, WCout = o_ref.shape
        kh = band_ref.shape[0]

        # Fused zero padding (height): zero the scratch, drop the image into the
        # interior rows. Width padding is already encoded as zeros in band_ref.
        xpad_ref[...] = jnp.zeros_like(xpad_ref)
        xpad_ref[pad_top:pad_top + H, :] = x_ref[0]

        # 9 matmuls with K = W*Cin (dx and ci folded into the contraction via the
        # banded weights). Statically unrolled; acc is ~2 vregs, no spill risk.
        acc = jnp.zeros((H, WCout), jnp.float32)
        for dy in range(kh):
            acc = acc + jnp.dot(
                xpad_ref[dy:dy + H, :],      # (H, W*Cin)  static sublane slice
                band_ref[dy],                # (W*Cin, W*Cout)
                preferred_element_type=jnp.float32,
            )
        o_ref[0] = (acc + bias_ref[...]).astype(o_ref.dtype)

    return kernel


def _build_banded_weights(weight_oihw, W, pad_left, dtype):
    """Fold (dx, ci) into a banded matrix per dy.

    band[dy, wq*Cin + ci, w*Cout + co] = weight[co, ci, dy, wq - w + pad_left]
    when 0 <= wq - w + pad_left < KW, else 0 (this also encodes the width
    zero-padding of the "same" conv).
    """
    Cout, Cin, kh, kw = weight_oihw.shape
    w_hwio = jnp.transpose(weight_oihw, (2, 3, 1, 0)).astype(dtype)  # (KH,KW,Cin,Cout)
    # sel[d, q, w] = 1 iff q == w + d - pad_left  (input column q feeds output
    # column w through width tap dx = d).
    sel = (np.arange(W)[None, :, None]
           == (np.arange(kw)[:, None, None] + np.arange(W)[None, None, :] - pad_left))
    sel = jnp.asarray(sel, dtype)
    band = jnp.einsum('dqw,ydio->yqiwo', sel, w_hwio)       # (KH, W, Cin, W, Cout)
    return band.reshape(kh, W * Cin, W * Cout)


def conv2d_mixed_size_forward(x_nchw, weight_oihw, bias):
    """Forward pass of Conv2dMixedSize (single 9x9 same-padded conv)."""
    N, Cin, H, W = x_nchw.shape
    Cout, _, kh, kw = weight_oihw.shape
    sh = sw = 1   # module defaults (stride=1, dilation=1, groups=1)
    dil = 1

    # _Conv2dSamePadding padding arithmetic (stride 1, dilation 1).
    oh, ow = math.ceil(H / sh), math.ceil(W / sw)
    pad_h = max((oh - 1) * sh + (kh - 1) * dil + 1 - H, 0)
    pad_w = max((ow - 1) * sw + (kw - 1) * dil + 1 - W, 0)
    pad_top, pad_left = pad_h // 2, pad_w // 2
    Hp = H + pad_h

    dtype = x_nchw.dtype

    # Layout plumbing only (single cheap pass over a tiny tensor): NCHW -> NHWC,
    # flatten (W, Cin) so W*Cin sits on the lane axis. The actual zero padding
    # is NOT materialised in HBM (fused into the kernel / the banded weights).
    x_flat = jnp.transpose(x_nchw, (0, 2, 3, 1)).reshape(N, H, W * Cin)

    band = _build_banded_weights(weight_oihw, W, pad_left, dtype)   # (KH, W*Cin, W*Cout)
    bias_tiled = jnp.tile(bias.astype(jnp.float32), (W,)).reshape(1, W * Cout)

    kernel = _make_conv_banded_kernel(pad_top)

    out_flat = pl.pallas_call(
        kernel,
        out_shape=jax.ShapeDtypeStruct((N, oh, ow * Cout), dtype),
        grid_spec=pltpu.PrefetchScalarGridSpec(
            num_scalar_prefetch=0,
            grid=(N,),
            in_specs=[
                pl.BlockSpec((1, H, W * Cin), lambda n: (n, 0, 0)),
                # Constant block index -> weights/bias DMA'd once, kept resident.
                pl.BlockSpec((kh, W * Cin, W * Cout), lambda n: (0, 0, 0)),
                pl.BlockSpec((1, W * Cout), lambda n: (0, 0)),
            ],
            out_specs=pl.BlockSpec((1, oh, ow * Cout), lambda n: (n, 0, 0)),
            scratch_shapes=[pltpu.VMEM((Hp, W * Cin), dtype)],
        ),
        # N >= 2 gives two parallel grid units for v7x's 2 TensorCores.
        # For production spatial sizes on v7x, add an H-stripe grid axis and an
        # explicit vmem_limit_bytes; for v6e, larger multi-sample blocks amortise
        # the ~0.35us/step pipeline overhead. Irrelevant at these toy shapes.
        compiler_params=pltpu.CompilerParams(
            dimension_semantics=("parallel",)),
    )(x_flat, band, bias_tiled)

    # Back to PyTorch NCHW. torch.cat over a single chunk is a no-op.
    return jnp.transpose(out_flat.reshape(N, oh, ow, Cout), (0, 3, 1, 2))


if __name__ == "__main__":
    # Small shapes consistent with the module's forward (NCHW input).
    N, Cin, Cout, H, W = 2, 4, 4, 16, 16
    p = 2.0

    # Split sizes (degenerate: one group with all channels).
    in_splits = _get_split_sizes(Cin, 1, p)
    out_splits = _get_split_sizes(Cout, 1, p)
    assert sum(in_splits) == Cin and sum(out_splits) == Cout

    key = jax.random.PRNGKey(0)
    kx, kw_, kb = jax.random.split(key, 3)

    x = jax.random.normal(kx, (N, Cin, H, W), dtype=jnp.float32)
    # Deterministic parameter init (synthetic; shapes follow nn.Conv2d(Cin, Cout, 9)).
    fan_in = Cin * KH * KW
    bound = 1.0 / math.sqrt(fan_in)
    weight = jax.random.uniform(kw_, (Cout, Cin, KH, KW), jnp.float32, -bound, bound)
    bias = jax.random.uniform(kb, (Cout,), jnp.float32, -bound, bound)

    out = conv2d_mixed_size_forward(x, weight, bias)
    out = jax.block_until_ready(out)

    # Self-check against XLA's reference convolution (same padding 4/4).
    ref = jax.lax.conv_general_dilated(
        x, weight, window_strides=(1, 1), padding=((4, 4), (4, 4)),
        dimension_numbers=("NCHW", "OIHW", "NCHW"),
    ) + bias.reshape(1, Cout, 1, 1)
    np.testing.assert_allclose(np.asarray(out), np.asarray(ref), rtol=1e-4, atol=1e-4)

    print("KERNEL_OK")
</pallas_src>

<mosaic_0001>
module attributes {stable_mosaic.version = 11 : i64} {
  func.func @kernel(%arg0: i32, %arg1: memref<1x16x64xf32, #tpu.memory_space<vmem>>, %arg2: memref<9x64x64xf32, #tpu.memory_space<vmem>>, %arg3: memref<1x64xf32, #tpu.memory_space<vmem>>, %arg4: memref<1x16x64xf32, #tpu.memory_space<vmem>>, %arg5: memref<24x64xf32, #tpu.memory_space<vmem>>) attributes {dimension_semantics = [#tpu.dimension_semantics<parallel>], iteration_bounds = array<i64: 2>, scalar_prefetch = 0 : i64, scratch_operands = 1 : i64, tpu.core_type = #tpu.core_type<tc>, window_params = [{transform_indices = @transform_0, window_bounds = array<i64: 1, 16, 64>}, {pipeline_mode = #tpu.pipeline_mode<synchronous>, transform_indices = @transform_1, window_bounds = array<i64: 9, 64, 64>}, {pipeline_mode = #tpu.pipeline_mode<synchronous>, transform_indices = @transform_2, window_bounds = array<i64: 1, 64>}, {transform_indices = @transform_3, window_bounds = array<i64: 1, 16, 64>}]} {
    %cst = arith.constant 0.000000e+00 : f32
    %0 = vector.broadcast %cst : f32 to vector<24x64xf32>
    %c0 = arith.constant 0 : index
    %c0_0 = arith.constant 0 : index
    %1 = vector.load %arg5[%c0, %c0_0] : memref<24x64xf32, #tpu.memory_space<vmem>>, vector<24x64xf32>
    tpu.vector_store %arg5[%c0, %c0_0], %0 {strides = array<i32>} : memref<24x64xf32, #tpu.memory_space<vmem>>, vector<24x64xf32>,
    %c0_1 = arith.constant 0 : index
    %c0_2 = arith.constant 0 : index
    %c0_3 = arith.constant 0 : index
    %2 = vector.load %arg1[%c0_1, %c0_2, %c0_3] : memref<1x16x64xf32, #tpu.memory_space<vmem>>, vector<1x16x64xf32>
    %3 = vector.shape_cast %2 : vector<1x16x64xf32> to vector<16x64xf32>
    %c4 = arith.constant 4 : index
    %c0_4 = arith.constant 0 : index
    %4 = vector.load %arg5[%c4, %c0_4] : memref<24x64xf32, #tpu.memory_space<vmem>>, vector<16x64xf32>
    tpu.vector_store %arg5[%c4, %c0_4], %3 {strides = array<i32>} : memref<24x64xf32, #tpu.memory_space<vmem>>, vector<16x64xf32>,
    %cst_5 = arith.constant 0.000000e+00 : f32
    %5 = vector.broadcast %cst_5 : f32 to vector<16x64xf32>
    %c0_6 = arith.constant 0 : index
    %c0_7 = arith.constant 0 : index
    %6 = vector.load %arg5[%c0_6, %c0_7] : memref<24x64xf32, #tpu.memory_space<vmem>>, vector<16x64xf32>
    %c0_8 = arith.constant 0 : index
    %c0_9 = arith.constant 0 : index
    %c0_10 = arith.constant 0 : index
    %7 = vector.load %arg2[%c0_8, %c0_9, %c0_10] : memref<9x64x64xf32, #tpu.memory_space<vmem>>, vector<1x64x64xf32>
    %8 = vector.shape_cast %7 : vector<1x64x64xf32> to vector<64x64xf32>
    %cst_11 = arith.constant dense<0.000000e+00> : vector<16x64xf32>
    %9 = tpu.matmul %6, %8, %cst_11 {dimension_numbers = #tpu.dot_dimension_numbers<[1], [0], [0], [1], [0, 0, 1, 1], [], []>} : vector<16x64xf32>, vector<64x64xf32>, vector<16x64xf32> -> vector<16x64xf32>
    %10 = arith.addf %5, %9 : vector<16x64xf32>
    %c1 = arith.constant 1 : index
    %c0_12 = arith.constant 0 : index
    %11 = vector.load %arg5[%c1, %c0_12] : memref<24x64xf32, #tpu.memory_space<vmem>>, vector<16x64xf32>
    %c1_13 = arith.constant 1 : index
    %c0_14 = arith.constant 0 : index
    %c0_15 = arith.constant 0 : index
    %12 = vector.load %arg2[%c1_13, %c0_14, %c0_15] : memref<9x64x64xf32, #tpu.memory_space<vmem>>, vector<1x64x64xf32>
    %13 = vector.shape_cast %12 : vector<1x64x64xf32> to vector<64x64xf32>
    %cst_16 = arith.constant dense<0.000000e+00> : vector<16x64xf32>
    %14 = tpu.matmul %11, %13, %cst_16 {dimension_numbers = #tpu.dot_dimension_numbers<[1], [0], [0], [1], [0, 0, 1, 1], [], []>} : vector<16x64xf32>, vector<64x64xf32>, vector<16x64xf32> -> vector<16x64xf32>
    %15 = arith.addf %10, %14 : vector<16x64xf32>
    %c2 = arith.constant 2 : index
    %c0_17 = arith.constant 0 : index
    %16 = vector.load %arg5[%c2, %c0_17] : memref<24x64xf32, #tpu.memory_space<vmem>>, vector<16x64xf32>
    %c2_18 = arith.constant 2 : index
    %c0_19 = arith.constant 0 : index
    %c0_20 = arith.constant 0 : index
    %17 = vector.load %arg2[%c2_18, %c0_19, %c0_20] : memref<9x64x64xf32, #tpu.memory_space<vmem>>, vector<1x64x64xf32>
    %18 = vector.shape_cast %17 : vector<1x64x64xf32> to vector<64x64xf32>
    %cst_21 = arith.constant dense<0.000000e+00> : vector<16x64xf32>
    %19 = tpu.matmul %16, %18, %cst_21 {dimension_numbers = #tpu.dot_dimension_numbers<[1], [0], [0], [1], [0, 0, 1, 1], [], []>} : vector<16x64xf32>, vector<64x64xf32>, vector<16x64xf32> -> vector<16x64xf32>
    %20 = arith.addf %15, %19 : vector<16x64xf32>
    %c3 = arith.constant 3 : index
    %c0_22 = arith.constant 0 : index
    %21 = vector.load %arg5[%c3, %c0_22] : memref<24x64xf32, #tpu.memory_space<vmem>>, vector<16x64xf32>
    %c3_23 = arith.constant 3 : index
    %c0_24 = arith.constant 0 : index
    %c0_25 = arith.constant 0 : index
    %22 = vector.load %arg2[%c3_23, %c0_24, %c0_25] : memref<9x64x64xf32, #tpu.memory_space<vmem>>, vector<1x64x64xf32>
    %23 = vector.shape_cast %22 : vector<1x64x64xf32> to vector<64x64xf32>
    %cst_26 = arith.constant dense<0.000000e+00> : vector<16x64xf32>
    %24 = tpu.matmul %21, %23, %cst_26 {dimension_numbers = #tpu.dot_dimension_numbers<[1], [0], [0], [1], [0, 0, 1, 1], [], []>} : vector<16x64xf32>, vector<64x64xf32>, vector<16x64xf32> -> vector<16x64xf32>
    %25 = arith.addf %20, %24 : vector<16x64xf32>
    %c4_27 = arith.constant 4 : index
    %c0_28 = arith.constant 0 : index
    %26 = vector.load %arg5[%c4_27, %c0_28] : memref<24x64xf32, #tpu.memory_space<vmem>>, vector<16x64xf32>
    %c4_29 = arith.constant 4 : index
    %c0_30 = arith.constant 0 : index
    %c0_31 = arith.constant 0 : index
    %27 = vector.load %arg2[%c4_29, %c0_30, %c0_31] : memref<9x64x64xf32, #tpu.memory_space<vmem>>, vector<1x64x64xf32>
    %28 = vector.shape_cast %27 : vector<1x64x64xf32> to vector<64x64xf32>
    %cst_32 = arith.constant dense<0.000000e+00> : vector<16x64xf32>
    %29 = tpu.matmul %26, %28, %cst_32 {dimension_numbers = #tpu.dot_dimension_numbers<[1], [0], [0], [1], [0, 0, 1, 1], [], []>} : vector<16x64xf32>, vector<64x64xf32>, vector<16x64xf32> -> vector<16x64xf32>
    %30 = arith.addf %25, %29 : vector<16x64xf32>
    %c5 = arith.constant 5 : index
    %c0_33 = arith.constant 0 : index
    %31 = vector.load %arg5[%c5, %c0_33] : memref<24x64xf32, #tpu.memory_space<vmem>>, vector<16x64xf32>
    %c5_34 = arith.constant 5 : index
    %c0_35 = arith.constant 0 : index
    %c0_36 = arith.constant 0 : index
    %32 = vector.load %arg2[%c5_34, %c0_35, %c0_36] : memref<9x64x64xf32, #tpu.memory_space<vmem>>, vector<1x64x64xf32>
    %33 = vector.shape_cast %32 : vector<1x64x64xf32> to vector<64x64xf32>
    %cst_37 = arith.constant dense<0.000000e+00> : vector<16x64xf32>
    %34 = tpu.matmul %31, %33, %cst_37 {dimension_numbers = #tpu.dot_dimension_numbers<[1], [0], [0], [1], [0, 0, 1, 1], [], []>} : vector<16x64xf32>, vector<64x64xf32>, vector<16x64xf32> -> vector<16x64xf32>
    %35 = arith.addf %30, %34 : vector<16x64xf32>
    %c6 = arith.constant 6 : index
    %c0_38 = arith.constant 0 : index
    %36 = vector.load %arg5[%c6, %c0_38] : memref<24x64xf32, #tpu.memory_space<vmem>>, vector<16x64xf32>
    %c6_39 = arith.constant 6 : index
    %c0_40 = arith.constant 0 : index
    %c0_41 = arith.constant 0 : index
    %37 = vector.load %arg2[%c6_39, %c0_40, %c0_41] : memref<9x64x64xf32, #tpu.memory_space<vmem>>, vector<1x64x64xf32>
    %38 = vector.shape_cast %37 : vector<1x64x64xf32> to vector<64x64xf32>
    %cst_42 = arith.constant dense<0.000000e+00> : vector<16x64xf32>
    %39 = tpu.matmul %36, %38, %cst_42 {dimension_numbers = #tpu.dot_dimension_numbers<[1], [0], [0], [1], [0, 0, 1, 1], [], []>} : vector<16x64xf32>, vector<64x64xf32>, vector<16x64xf32> -> vector<16x64xf32>
    %40 = arith.addf %35, %39 : vector<16x64xf32>
    %c7 = arith.constant 7 : index
    %c0_43 = arith.constant 0 : index
    %41 = vector.load %arg5[%c7, %c0_43] : memref<24x64xf32, #tpu.memory_space<vmem>>, vector<16x64xf32>
    %c7_44 = arith.constant 7 : index
    %c0_45 = arith.constant 0 : index
    %c0_46 = arith.constant 0 : index
    %42 = vector.load %arg2[%c7_44, %c0_45, %c0_46] : memref<9x64x64xf32, #tpu.memory_space<vmem>>, vector<1x64x64xf32>
    %43 = vector.shape_cast %42 : vector<1x64x64xf32> to vector<64x64xf32>
    %cst_47 = arith.constant dense<0.000000e+00> : vector<16x64xf32>
    %44 = tpu.matmul %41, %43, %cst_47 {dimension_numbers = #tpu.dot_dimension_numbers<[1], [0], [0], [1], [0, 0, 1, 1], [], []>} : vector<16x64xf32>, vector<64x64xf32>, vector<16x64xf32> -> vector<16x64xf32>
    %45 = arith.addf %40, %44 : vector<16x64xf32>
    %c8 = arith.constant 8 : index
    %c0_48 = arith.constant 0 : index
    %46 = vector.load %arg5[%c8, %c0_48] : memref<24x64xf32, #tpu.memory_space<vmem>>, vector<16x64xf32>
    %c8_49 = arith.constant 8 : index
    %c0_50 = arith.constant 0 : index
    %c0_51 = arith.constant 0 : index
    %47 = vector.load %arg2[%c8_49, %c0_50, %c0_51] : memref<9x64x64xf32, #tpu.memory_space<vmem>>, vector<1x64x64xf32>
    %48 = vector.shape_cast %47 : vector<1x64x64xf32> to vector<64x64xf32>
    %cst_52 = arith.constant dense<0.000000e+00> : vector<16x64xf32>
    %49 = tpu.matmul %46, %48, %cst_52 {dimension_numbers = #tpu.dot_dimension_numbers<[1], [0], [0], [1], [0, 0, 1, 1], [], []>} : vector<16x64xf32>, vector<64x64xf32>, vector<16x64xf32> -> vector<16x64xf32>
    %50 = arith.addf %45, %49 : vector<16x64xf32>
    %c0_53 = arith.constant 0 : index
    %c0_54 = arith.constant 0 : index
    %51 = vector.load %arg3[%c0_53, %c0_54] : memref<1x64xf32, #tpu.memory_space<vmem>>, vector<1x64xf32>
    %52 = vector.broadcast %51 : vector<1x64xf32> to vector<16x64xf32>
    %53 = arith.addf %50, %52 : vector<16x64xf32>
    %c0_55 = arith.constant 0 : index
    %c0_56 = arith.constant 0 : index
    %c0_57 = arith.constant 0 : index
    %54 = vector.load %arg4[%c0_55, %c0_56, %c0_57] : memref<1x16x64xf32, #tpu.memory_space<vmem>>, vector<1x16x64xf32>
    %55 = vector.shape_cast %54 : vector<1x16x64xf32> to vector<16x64xf32>
    %56 = vector.shape_cast %53 : vector<16x64xf32> to vector<1x16x64xf32>
    tpu.vector_store %arg4[%c0_55, %c0_56, %c0_57], %56 {strides = array<i32>} : memref<1x16x64xf32, #tpu.memory_space<vmem>>, vector<1x16x64xf32>,
    return
  }
  func.func @transform_0(%arg0: i32) -> (i32, i32, i32) {
    %c0_i32 = arith.constant 0 : i32
    %c0_i32_0 = arith.constant 0 : i32
    %c0_i32_1 = arith.constant 0 : i32
    return %arg0, %c0_i32, %c0_i32_0 : i32, i32, i32
  }
  func.func @transform_1(%arg0: i32) -> (i32, i32, i32) {
    %c0_i32 = arith.constant 0 : i32
    %c0_i32_0 = arith.constant 0 : i32
    %c0_i32_1 = arith.constant 0 : i32
    %c0_i32_2 = arith.constant 0 : i32
    return %c0_i32, %c0_i32_0, %c0_i32_1 : i32, i32, i32
  }
  func.func @transform_2(%arg0: i32) -> (i32, i32) {
    %c0_i32 = arith.constant 0 : i32
    %c0_i32_0 = arith.constant 0 : i32
    %c0_i32_1 = arith.constant 0 : i32
    return %c0_i32, %c0_i32_0 : i32, i32
  }
  func.func @transform_3(%arg0: i32) -> (i32, i32, i32) {
    %c0_i32 = arith.constant 0 : i32
    %c0_i32_0 = arith.constant 0 : i32
    %c0_i32_1 = arith.constant 0 : i32
    return %arg0, %c0_i32, %c0_i32_0 : i32, i32, i32
  }
}

</mosaic_0001>

<llo_original>
// kernel: tpu_custom_call.1
$region0: #{tpu_custom_call.1}
  #allocation0 [shape = 'u32[]', space=smem, size = 0x4, offset = 0x4, fixed_abs, tag = 'smem constant byte address 0x4 - core index']
  #allocation1 [shape = 'u32[144,128]{1,0:T(1,128)}', space=vmem, size = 0x12000, scoped, tag = 'internal scratch']
  #allocation2 [shape = 'f32[24,64]{1,0:T(8,128)}', space=vmem, size = 0x3000, scoped, tag = 'scratch operand']
  %s0 = inlined_call_operand.hbm [shape: f32[2,16,64], index: 0, kind: input, shape index: {}]
  %s1 = inlined_call_operand.hbm [shape: f32[9,64,64], index: 1, kind: input, shape index: {}]
  %s2 = inlined_call_operand.vmem [shape: f32[1,64], index: 2, kind: input, shape index: {}]
  %s3 = inlined_call_operand.hbm [shape: f32[2,16,64], index: 3, kind: output, shape index: {}]
  %s4 = sld [smem:[#allocation0]]
  $region53: #{tpu_custom_call.1} parent=0
    _
  %s6 = ssub.s32 1, %s4
  %s7 = scalar_select 0, %s6, %s4
  $region1: #{tpu_custom_call.1} parent=0
    #allocation3 [shape = 'u8[16384]{0}', space=vmem, size = 0x4000, scoped, tag = 'input window, operand 0']
    #allocation4 [shape = 's32[2]{0}', space=sflag, size = 0x8, scoped, tag = 'scoped memory for tpu_custom_call.1']
    #allocation5 [shape = 's32[2]{0}', space=sflag, size = 0x8, scoped, tag = 'scoped memory for tpu_custom_call.1']
    #allocation6 [shape = 'u8[294912]{0}', space=vmem, size = 0x48000, scoped, tag = 'input window, operand 1, single buffered']
    #allocation7 [shape = 's32[1]{0}', space=sflag, size = 0x4, scoped, tag = 'scoped memory for tpu_custom_call.1']
    #allocation8 [shape = 'u8[16384]{0}', space=vmem, size = 0x4000, scoped, tag = 'output window, operand 0']
    %8 = vsyncpa [#allocation4], 0
    %s9 = scalar_lea.sflag [#allocation4], 1
    %10 = vsyncpa %s9, 0
    %11 = vsyncpa [#allocation7], 0
    %12 = vsyncpa [#allocation5], 0
    %s13 = scalar_lea.sflag [#allocation5], 1
    %14 = vsyncpa %s13, 0
    loop: start=0, step=1, limit=4
    $region2: #{tpu_custom_call.1} parent=1 // loop_pre_header
      _
    $region3: #{tpu_custom_call.1} parent=1 // loop_header
      %s16 = sphi 0, %s20
      %p17 = scmp.ge.s32.totalorder %s16, 4
      %s26 = sphi 0, %s28
      %s29 = sphi 0, %s26
      %s30 = sphi 0, %s29
      %s46 = sphi 0, %s30
      %s50 = sphi 0, %s50
      %s52 = sphi 0, %s50
      %s53 = sphi 0, %s52
      %s67 = sphi 0, %s53
      %s71 = sphi 0, %s71
      %s73 = sphi 0, %s71
      %s74 = sphi 0, %s73
      %s88 = sphi 0, %s74
      %s94 = sphi 0, %s96
      %s97 = sphi 0, %s94
      %s98 = sphi 0, %s97
      %s114 = sphi 0, %s98
    $region4: #{tpu_custom_call.1} parent=1 // loop_header_branch
      %19 = sbr.rel (%p17) target = $region8
    $region5: #{tpu_custom_call.1} parent=1 // loop_body
      %s21 = ssub.s32 %s16, 1
      %s22 = ssub.s32 %s16, 2
      %s23 = sadd.s32 %s16, 1
      %s24 = ssub.s32 %s16, %s23
      %p25 = scmp.eq.s32.totalorder %s24, 0
      %s27 = sadd.s32 %s26, 1
      %s28 = scalar_select %p25, %s26, %s27
      %p31 = pneg %p25
      %p32 = scmp.eq.s32.totalorder %s16, 1
      %p33 = por %p31, %p32
      %p34 = scmp.ne.s32.totalorder %s26, %s29
      %p35 = scmp.eq.s32.totalorder %s16, 0
      %p36 = por %p34, %p35
      %p37 = scmp.ne.s32.totalorder %s26, %s29
      %p38 = scmp.eq.s32.totalorder %s21, 1
      %p39 = por %p37, %p38
      %p40 = scmp.ne.s32.totalorder %s29, %s30
      %p41 = scmp.eq.s32.totalorder %s21, 0
      %p42 = por %p40, %p41
      %p43 = scmp.ne.s32.totalorder %s29, %s30
      %p44 = scmp.eq.s32.totalorder %s22, 1
      %p45 = por %p43, %p44
      %p47 = scmp.ne.s32.totalorder %s30, %s46
      %p48 = scmp.eq.s32.totalorder %s22, 0
      %p49 = por %p47, %p48
      %s51 = sadd.s32 %s50, 1
      %p54 = scmp.eq.s32.totalorder %s16, 1
      %p55 = scmp.ne.s32.totalorder %s50, %s52
      %p56 = scmp.eq.s32.totalorder %s16, 0
      %p57 = por %p55, %p56
      %p58 = scmp.ne.s32.totalorder %s50, %s52
      %p59 = scmp.eq.s32.totalorder %s21, 1
      %p60 = por %p58, %p59
      %p61 = scmp.ne.s32.totalorder %s52, %s53
      %p62 = scmp.eq.s32.totalorder %s21, 0
      %p63 = por %p61, %p62
      %p64 = scmp.ne.s32.totalorder %s52, %s53
      %p65 = scmp.eq.s32.totalorder %s22, 1
      %p66 = por %p64, %p65
      %p68 = scmp.ne.s32.totalorder %s53, %s67
      %p69 = scmp.eq.s32.totalorder %s22, 0
      %p70 = por %p68, %p69
      %s72 = sadd.s32 %s71, 1
      %p75 = scmp.eq.s32.totalorder %s16, 1
      %p76 = scmp.ne.s32.totalorder %s71, %s73
      %p77 = scmp.eq.s32.totalorder %s16, 0
      %p78 = por %p76, %p77
      %p79 = scmp.ne.s32.totalorder %s71, %s73
      %p80 = scmp.eq.s32.totalorder %s21, 1
      %p81 = por %p79, %p80
      %p82 = scmp.ne.s32.totalorder %s73, %s74
      %p83 = scmp.eq.s32.totalorder %s21, 0
      %p84 = por %p82, %p83
      %p85 = scmp.ne.s32.totalorder %s73, %s74
      %p86 = scmp.eq.s32.totalorder %s22, 1
      %p87 = por %p85, %p86
      %p89 = scmp.ne.s32.totalorder %s74, %s88
      %p90 = scmp.eq.s32.totalorder %s22, 0
      %p91 = por %p89, %p90
      %s92 = ssub.s32 %s16, %s23
      %p93 = scmp.eq.s32.totalorder %s92, 0
      %s95 = sadd.s32 %s94, 1
      %s96 = scalar_select %p93, %s94, %s95
      %p99 = pneg %p93
      %p100 = scmp.eq.s32.totalorder %s16, 1
      %p101 = por %p99, %p100
      %p102 = scmp.ne.s32.totalorder %s94, %s97
      %p103 = scmp.eq.s32.totalorder %s16, 0
      %p104 = por %p102, %p103
      %p105 = scmp.ne.s32.totalorder %s94, %s97
      %p106 = scmp.eq.s32.totalorder %s21, 1
      %p107 = por %p105, %p106
      %p108 = scmp.ne.s32.totalorder %s97, %s98
      %p109 = scmp.eq.s32.totalorder %s21, 0
      %p110 = por %p108, %p109
      %p111 = scmp.ne.s32.totalorder %s97, %s98
      %p112 = scmp.eq.s32.totalorder %s22, 1
      %p113 = por %p111, %p112
      %p115 = scmp.ne.s32.totalorder %s98, %s114
      %p116 = scmp.eq.s32.totalorder %s22, 0
      %p117 = por %p115, %p116
      %p118 = scmp.le.s32.totalorder 1, %s16
      %p119 = scmp.lt.s32.totalorder %s16, 3
      %p120 = pnand %p118, %p119
      %p121 = pneg %p120
      // Predicated region
      $region9: #{tpu_custom_call.1} parent=5 // pred_check
        _
      $region10: #{tpu_custom_call.1} parent=5 // pred_check_branch
        %123 = sbr.rel (%p120) target = $region12
      $region11: #{tpu_custom_call.1} parent=5 // pred_region
        %s124 = ssub.s32 %s16, 1
        // Predicated region
        $region13: #{tpu_custom_call.1} parent=11 // pred_check
          %p125 = pneg %p63
        $region14: #{tpu_custom_call.1} parent=11 // pred_check_branch
          %127 = sbr.rel (%p125) target = $region16
        $region15: #{tpu_custom_call.1} parent=11 // pred_region
          %s129 = ssub.s32 9216, 9216
          %130 = vsyncadd [#allocation7], %s129
          %s131 = sshll.u32 [#allocation6], 4
          %s132 = int_to_ptr.vmem [resolvable:$true] %s131
          %137 = dma.hbm_to_vmem [thread:$0]  %s1, 9216, %s132, [#allocation7], 128, 128, 8
        $region16: #{tpu_custom_call.1} parent=11 // pred_fallthru
          _
        // Predicated region
        $region17: #{tpu_custom_call.1} parent=11 // pred_check
          %p138 = pneg %p84
        $region18: #{tpu_custom_call.1} parent=11 // pred_check_branch
          %140 = sbr.rel (%p138) target = $region20
        $region19: #{tpu_custom_call.1} parent=11 // pred_region
          _
        $region20: #{tpu_custom_call.1} parent=11 // pred_fallthru
          _
      $region12: #{tpu_custom_call.1} parent=5 // pred_fallthru
        _
      %p141 = scmp.lt.s32.totalorder %s16, 2
      // Predicated region
      $region21: #{tpu_custom_call.1} parent=5 // pred_check
        %p142 = pneg %p141
      $region22: #{tpu_custom_call.1} parent=5 // pred_check_branch
        %144 = sbr.rel (%p142) target = $region24
      $region23: #{tpu_custom_call.1} parent=5 // pred_region
        // Predicated region
        $region25: #{tpu_custom_call.1} parent=23 // pred_check
          %p145 = pneg %p36
        $region26: #{tpu_custom_call.1} parent=23 // pred_check_branch
          %147 = sbr.rel (%p145) target = $region28
        $region27: #{tpu_custom_call.1} parent=23 // pred_region
          %s148 = sand.u32 %s26, 1
          %s149 = scalar_lea.sflag [#allocation4], %s148
          %s150 = sand.u32 %s26, 1
          %s151 = smul.addr %s150, 16
          %s152 = scalar_lea.vmem [#allocation3], %s151
          %s154 = ssub.s32 256, 256
          %155 = vsyncadd %s149, %s154
          %s156 = smul.addr %s16, 2
          %s157 = smul.addr %s156, 128
          %s158 = scalar_lea.hbm %s0, %s157
          %s159 = sshll.u32 %s152, 4
          %s160 = int_to_ptr.vmem [resolvable:$true] %s159
          %165 = dma.hbm_to_vmem [thread:$0]  %s158, 256, %s160, %s149, 128, 128, 8
        $region28: #{tpu_custom_call.1} parent=23 // pred_fallthru
          _
      $region24: #{tpu_custom_call.1} parent=5 // pred_fallthru
        _
      %p166 = scmp.le.s32.totalorder 1, %s16
      %p167 = scmp.lt.s32.totalorder %s16, 3
      %p168 = pnand %p166, %p167
      %p169 = pneg %p168
      // Predicated region
      $region29: #{tpu_custom_call.1} parent=5 // pred_check
        _
      $region30: #{tpu_custom_call.1} parent=5 // pred_check_branch
        %171 = sbr.rel (%p168) target = $region32
      $region31: #{tpu_custom_call.1} parent=5 // pred_region
        %s172 = ssub.s32 %s16, 1
        %s173 = sand.u32 %s29, 1
        %s174 = scalar_lea.sflag [#allocation4], %s173
        %s175 = sand.u32 %s29, 1
        %s176 = smul.addr %s175, 16
        %s177 = scalar_lea.vmem [#allocation3], %s176
        // Predicated region
        $region33: #{tpu_custom_call.1} parent=31 // pred_check
          %p178 = pneg %p42
        $region34: #{tpu_custom_call.1} parent=31 // pred_check_branch
          %180 = sbr.rel (%p178) target = $region36
        $region35: #{tpu_custom_call.1} parent=31 // pred_region
          %181 = dma.done %s174, 256
        $region36: #{tpu_custom_call.1} parent=31 // pred_fallthru
          _
        // Predicated region
        $region37: #{tpu_custom_call.1} parent=31 // pred_check
          %p182 = pneg %p63
        $region38: #{tpu_custom_call.1} parent=31 // pred_check_branch
          %184 = sbr.rel (%p182) target = $region40
        $region39: #{tpu_custom_call.1} parent=31 // pred_region
          %185 = dma.done [#allocation7], 9216
        $region40: #{tpu_custom_call.1} parent=31 // pred_fallthru
          _
        %s186 = sand.u32 %s29, 1
        %s187 = scalar_lea.sflag [#allocation4], %s186
        %s188 = sand.u32 %s29, 1
        %s189 = smul.addr %s188, 16
        %s190 = scalar_lea.vmem [#allocation3], %s189
        %p191 = pneg %p42
        %p192 = pneg %p39
        %p193 = pneg %p63
        %p194 = pneg %p60
        %p195 = pneg %p84
        %p196 = pneg %p81
        %p197 = pneg %p110
        %p198 = pneg %p107
        %s199 = sand.u32 %s97, 1
        %s200 = scalar_lea.sflag [#allocation5], %s199
        %s201 = sand.u32 %s97, 1
        %s202 = smul.addr %s201, 16
        %s203 = scalar_lea.vmem [#allocation8], %s202
        %vm204 = vcmask 523264
        %205 = vst.msk [vmem:[#allocation2] sm:$0xff] %vm204, 0.0
        %206 = vst.msk [vmem:[#allocation2 + $0x8] sm:$0xff] %vm204, 0.0
        %207 = vst.msk [vmem:[#allocation2 + $0x10] sm:$0xff] %vm204, 0.0
        %v208 = vld [vmem:[%s177] sm:$0xff]
        %v209 = vld [vmem:[%s177 + $0x8] sm:$0xff]
        %210 = vst.msk [vmem:[#allocation2 + $0x4] sm:$0xff] %vm204, %v208
        %211 = vst.msk [vmem:[#allocation2 + $0xc] sm:$0xff] %vm204, %v209
        %v212 = vld [vmem:[#allocation2] sm:$0xff]
        %v213 = vld [vmem:[#allocation2 + $0x8] sm:$0xff]
        %v214 = vld [vmem:[#allocation6] sm:$0xff]
        %v215 = vld [vmem:[#allocation6 + $0x8] sm:$0xff]
        %v216 = vld [vmem:[#allocation6 + $0x10] sm:$0xff]
        %v217 = vld [vmem:[#allocation6 + $0x18] sm:$0xff]
        %v218 = vld [vmem:[#allocation6 + $0x20] sm:$0xff]
        %v219 = vld [vmem:[#allocation6 + $0x28] sm:$0xff]
        %v220 = vld [vmem:[#allocation6 + $0x30] sm:$0xff]
        %v221 = vld [vmem:[#allocation6 + $0x38] sm:$0xff]
        %v222 = vld [vmem:[#allocation2 + $0x1] sm:$0xff]
        %v223 = vld [vmem:[#allocation2 + $0x9] sm:$0xff]
        %s224 = scalar_lea.vmem [#allocation6], 64
        %v225 = vld [vmem:[%s224] sm:$0xff]
        %v226 = vld [vmem:[%s224 + $0x8] sm:$0xff]
        %v227 = vld [vmem:[%s224 + $0x10] sm:$0xff]
        %v228 = vld [vmem:[%s224 + $0x18] sm:$0xff]
        %v229 = vld [vmem:[%s224 + $0x20] sm:$0xff]
        %v230 = vld [vmem:[%s224 + $0x28] sm:$0xff]
        %v231 = vld [vmem:[%s224 + $0x30] sm:$0xff]
        %v232 = vld [vmem:[%s224 + $0x38] sm:$0xff]
        %v234 = vsel %vm204, %v222, 0
        %v237 = vsel %vm204, %v223, 0
        %239 = vmatprep.subr.mxu0 0.0
        %240 = vmatpush1.msra.mxu0 %v225
        %241 = vmatprep.subr.mxu0 0.0
        %242 = vmatpush1.msra.mxu0 %v226
        %243 = vmatprep.subr.mxu0 0.0
        %244 = vmatpush1.msra.mxu0 %v227
        %245 = vmatprep.subr.mxu0 0.0
        %246 = vmatpush1.msra.mxu0 %v228
        %247 = vmatprep.subr.mxu0 0.0
        %248 = vmatpush1.msra.mxu0 %v229
        %249 = vmatprep.subr.mxu0 0.0
        %250 = vmatpush1.msra.mxu0 %v230
        %251 = vmatprep.subr.mxu0 0.0
        %252 = vmatpush1.msra.mxu0 %v231
        %253 = vmatprep.subr.mxu0 0.0
        %254 = vmatpush1.msra.mxu0 %v232
        %255 = vmatprep.subr.mxu0 0.0
        %256 = vmatpush1.msra.mxu0 0.0
        %257 = vmatprep.subr.mxu0 0.0
        %258 = vmatpush1.msra.mxu0 0.0
        %259 = vmatprep.subr.mxu0 0.0
        %260 = vmatpush1.msra.mxu0 0.0
        %261 = vmatprep.subr.mxu0 0.0
        %262 = vmatpush1.msra.mxu0 0.0
        %263 = vmatprep.subr.mxu0 0.0
        %264 = vmatpush1.msra.mxu0 0.0
        %265 = vmatprep.subr.mxu0 0.0
        %266 = vmatpush1.msra.mxu0 0.0
        %267 = vmatprep.subr.mxu0 0.0
        %268 = vmatpush1.msra.mxu0 0.0
        %269 = vmatprep.subr.mxu0 0.0
        %270 = vmatpush1.msra.mxu0 0.0
        %271 = vmatprep.subr.mxu0 0.0
        %272 = vmatpush1.msra.mxu0 0.0
        %273 = vmatprep.subr.mxu0 0.0
        %274 = vmatpush1.msra.mxu0 0.0
        %275 = vmatprep.subr.mxu0 0.0
        %276 = vmatpush1.msra.mxu0 0.0
        %277 = vmatprep.subr.mxu0 0.0
        %278 = vmatpush1.msra.mxu0 0.0
        %279 = vmatprep.subr.mxu0 0.0
        %280 = vmatpush1.msra.mxu0 0.0
        %281 = vmatprep.subr.mxu0 0.0
        %282 = vmatpush1.msra.mxu0 0.0
        %283 = vmatprep.subr.mxu0 0.0
        %284 = vmatpush1.msra.mxu0 0.0
        %285 = vmatprep.subr.mxu0 0.0
        %286 = vmatpush1.msra.mxu0 0.0
        %287 = vmatprep.subr.mxu0 0.0
        %288 = vmatpush1.msra.mxu0 0.0
        %289 = vmatprep.subr.mxu0 0.0
        %290 = vmatpush1.msra.mxu0 0.0
        %291 = vmatprep.subr.mxu0 0.0
        %292 = vmatpush1.msra.mxu0 0.0
        %293 = vmatprep.subr.mxu0 0.0
        %294 = vmatpush1.msra.mxu0 0.0
        %295 = vmatprep.subr.mxu0 0.0
        %296 = vmatpush1.msra.mxu0 0.0
        %297 = vmatprep.subr.mxu0 0.0
        %298 = vmatpush1.msra.mxu0 0.0
        %299 = vmatprep.subr.mxu0 0.0
        %300 = vmatpush1.msra.mxu0 0.0
        %301 = vmatprep.subr.mxu0 0.0
        %302 = vmatpush1.msra.mxu0 0.0
        %303 = vmatprep.mubr.f32.mxu0 0.0
        %304 = vmatmul.mubr.f32.gmra.mrb[0].mxu0 %v234
        %v305 = vpop.f32.mrb[0].mxu0
        %v306 = vadd.f32 0.0, %v305
        %v307 = vpop.f32.mrb[0].mxu0
        %308 = vmatprep.mubr.f32.mxu0 0.0
        %309 = vmatmul.mubr.f32.gmra.mrb[0].mxu0 %v237
        %v310 = vpop.f32.mrb[0].mxu0
        %v311 = vadd.f32 0.0, %v310
        %v312 = vpop.f32.mrb[0].mxu0
        %313 = vdwg.mxu0
        %v315 = vsel %vm204, %v212, 0
        %v318 = vsel %vm204, %v213, 0
        %320 = vmatprep.subr.mxu0 0.0
        %321 = vmatpush1.msra.mxu0 %v214
        %322 = vmatprep.subr.mxu0 0.0
        %323 = vmatpush1.msra.mxu0 %v215
        %324 = vmatprep.subr.mxu0 0.0
        %325 = vmatpush1.msra.mxu0 %v216
        %326 = vmatprep.subr.mxu0 0.0
        %327 = vmatpush1.msra.mxu0 %v217
        %328 = vmatprep.subr.mxu0 0.0
        %329 = vmatpush1.msra.mxu0 %v218
        %330 = vmatprep.subr.mxu0 0.0
        %331 = vmatpush1.msra.mxu0 %v219
        %332 = vmatprep.subr.mxu0 0.0
        %333 = vmatpush1.msra.mxu0 %v220
        %334 = vmatprep.subr.mxu0 0.0
        %335 = vmatpush1.msra.mxu0 %v221
        %336 = vmatprep.subr.mxu0 0.0
        %337 = vmatpush1.msra.mxu0 0.0
        %338 = vmatprep.subr.mxu0 0.0
        %339 = vmatpush1.msra.mxu0 0.0
        %340 = vmatprep.subr.mxu0 0.0
        %341 = vmatpush1.msra.mxu0 0.0
        %342 = vmatprep.subr.mxu0 0.0
        %343 = vmatpush1.msra.mxu0 0.0
        %344 = vmatprep.subr.mxu0 0.0
        %345 = vmatpush1.msra.mxu0 0.0
        %346 = vmatprep.subr.mxu0 0.0
        %347 = vmatpush1.msra.mxu0 0.0
        %348 = vmatprep.subr.mxu0 0.0
        %349 = vmatpush1.msra.mxu0 0.0
        %350 = vmatprep.subr.mxu0 0.0
        %351 = vmatpush1.msra.mxu0 0.0
        %352 = vmatprep.subr.mxu0 0.0
        %353 = vmatpush1.msra.mxu0 0.0
        %354 = vmatprep.subr.mxu0 0.0
        %355 = vmatpush1.msra.mxu0 0.0
        %356 = vmatprep.subr.mxu0 0.0
        %357 = vmatpush1.msra.mxu0 0.0
        %358 = vmatprep.subr.mxu0 0.0
        %359 = vmatpush1.msra.mxu0 0.0
        %360 = vmatprep.subr.mxu0 0.0
        %361 = vmatpush1.msra.mxu0 0.0
        %362 = vmatprep.subr.mxu0 0.0
        %363 = vmatpush1.msra.mxu0 0.0
        %364 = vmatprep.subr.mxu0 0.0
        %365 = vmatpush1.msra.mxu0 0.0
        %366 = vmatprep.subr.mxu0 0.0
        %367 = vmatpush1.msra.mxu0 0.0
        %368 = vmatprep.subr.mxu0 0.0
        %369 = vmatpush1.msra.mxu0 0.0
        %370 = vmatprep.subr.mxu0 0.0
        %371 = vmatpush1.msra.mxu0 0.0
        %372 = vmatprep.subr.mxu0 0.0
        %373 = vmatpush1.msra.mxu0 0.0
        %374 = vmatprep.subr.mxu0 0.0
        %375 = vmatpush1.msra.mxu0 0.0
        %376 = vmatprep.subr.mxu0 0.0
        %377 = vmatpush1.msra.mxu0 0.0
        %378 = vmatprep.subr.mxu0 0.0
        %379 = vmatpush1.msra.mxu0 0.0
        %380 = vmatprep.subr.mxu0 0.0
        %381 = vmatpush1.msra.mxu0 0.0
        %382 = vmatprep.subr.mxu0 0.0
        %383 = vmatpush1.msra.mxu0 0.0
        %384 = vmatprep.mubr.f32.mxu0 0.0
        %385 = vmatmul.mubr.f32.gmra.mrb[0].mxu0 %v315
        %v386 = vpop.f32.mrb[0].mxu0
        %v387 = vadd.f32 %v306, %v386
        %v388 = vpop.f32.mrb[0].mxu0
        %389 = vmatprep.mubr.f32.mxu0 0.0
        %390 = vmatmul.mubr.f32.gmra.mrb[0].mxu0 %v318
        %v391 = vpop.f32.mrb[0].mxu0
        %v392 = vadd.f32 %v311, %v391
        %v393 = vpop.f32.mrb[0].mxu0
        %394 = vdwg.mxu0
        %v395 = vld [vmem:[#allocation2 + $0x2] sm:$0xff]
        %v396 = vld [vmem:[#allocation2 + $0xa] sm:$0xff]
        %s397 = scalar_lea.vmem [#allocation6], 128
        %v398 = vld [vmem:[%s397] sm:$0xff]
        %v399 = vld [vmem:[%s397 + $0x8] sm:$0xff]
        %v400 = vld [vmem:[%s397 + $0x10] sm:$0xff]
        %v401 = vld [vmem:[%s397 + $0x18] sm:$0xff]
        %v402 = vld [vmem:[%s397 + $0x20] sm:$0xff]
        %v403 = vld [vmem:[%s397 + $0x28] sm:$0xff]
        %v404 = vld [vmem:[%s397 + $0x30] sm:$0xff]
        %v405 = vld [vmem:[%s397 + $0x38] sm:$0xff]
        %v407 = vsel %vm204, %v395, 0
        %v410 = vsel %vm204, %v396, 0
        %412 = vmatprep.subr.mxu0 0.0
        %413 = vmatpush1.msra.mxu0 %v398
        %414 = vmatprep.subr.mxu0 0.0
        %415 = vmatpush1.msra.mxu0 %v399
        %416 = vmatprep.subr.mxu0 0.0
        %417 = vmatpush1.msra.mxu0 %v400
        %418 = vmatprep.subr.mxu0 0.0
        %419 = vmatpush1.msra.mxu0 %v401
        %420 = vmatprep.subr.mxu0 0.0
        %421 = vmatpush1.msra.mxu0 %v402
        %422 = vmatprep.subr.mxu0 0.0
        %423 = vmatpush1.msra.mxu0 %v403
        %424 = vmatprep.subr.mxu0 0.0
        %425 = vmatpush1.msra.mxu0 %v404
        %426 = vmatprep.subr.mxu0 0.0
        %427 = vmatpush1.msra.mxu0 %v405
        %428 = vmatprep.subr.mxu0 0.0
        %429 = vmatpush1.msra.mxu0 0.0
        %430 = vmatprep.subr.mxu0 0.0
        %431 = vmatpush1.msra.mxu0 0.0
        %432 = vmatprep.subr.mxu0 0.0
        %433 = vmatpush1.msra.mxu0 0.0
        %434 = vmatprep.subr.mxu0 0.0
        %435 = vmatpush1.msra.mxu0 0.0
        %436 = vmatprep.subr.mxu0 0.0
        %437 = vmatpush1.msra.mxu0 0.0
        %438 = vmatprep.subr.mxu0 0.0
        %439 = vmatpush1.msra.mxu0 0.0
        %440 = vmatprep.subr.mxu0 0.0
        %441 = vmatpush1.msra.mxu0 0.0
        %442 = vmatprep.subr.mxu0 0.0
        %443 = vmatpush1.msra.mxu0 0.0
        %444 = vmatprep.subr.mxu0 0.0
        %445 = vmatpush1.msra.mxu0 0.0
        %446 = vmatprep.subr.mxu0 0.0
        %447 = vmatpush1.msra.mxu0 0.0
        %448 = vmatprep.subr.mxu0 0.0
        %449 = vmatpush1.msra.mxu0 0.0
        %450 = vmatprep.subr.mxu0 0.0
        %451 = vmatpush1.msra.mxu0 0.0
        %452 = vmatprep.subr.mxu0 0.0
        %453 = vmatpush1.msra.mxu0 0.0
        %454 = vmatprep.subr.mxu0 0.0
        %455 = vmatpush1.msra.mxu0 0.0
        %456 = vmatprep.subr.mxu0 0.0
        %457 = vmatpush1.msra.mxu0 0.0
        %458 = vmatprep.subr.mxu0 0.0
        %459 = vmatpush1.msra.mxu0 0.0
        %460 = vmatprep.subr.mxu0 0.0
        %461 = vmatpush1.msra.mxu0 0.0
        %462 = vmatprep.subr.mxu0 0.0
        %463 = vmatpush1.msra.mxu0 0.0
        %464 = vmatprep.subr.mxu0 0.0
        %465 = vmatpush1.msra.mxu0 0.0
        %466 = vmatprep.subr.mxu0 0.0
        %467 = vmatpush1.msra.mxu0 0.0
        %468 = vmatprep.subr.mxu0 0.0
        %469 = vmatpush1.msra.mxu0 0.0
        %470 = vmatprep.subr.mxu0 0.0
        %471 = vmatpush1.msra.mxu0 0.0
        %472 = vmatprep.subr.mxu0 0.0
        %473 = vmatpush1.msra.mxu0 0.0
        %474 = vmatprep.subr.mxu0 0.0
        %475 = vmatpush1.msra.mxu0 0.0
        %476 = vmatprep.mubr.f32.mxu0 0.0
        %477 = vmatmul.mubr.f32.gmra.mrb[0].mxu0 %v407
        %v478 = vpop.f32.mrb[0].mxu0
        %v479 = vadd.f32 0.0, %v478
        %v480 = vpop.f32.mrb[0].mxu0
        %481 = vmatprep.mubr.f32.mxu0 0.0
        %482 = vmatmul.mubr.f32.gmra.mrb[0].mxu0 %v410
        %v483 = vpop.f32.mrb[0].mxu0
        %v484 = vadd.f32 0.0, %v483
        %v485 = vpop.f32.mrb[0].mxu0
        %486 = vdwg.mxu0
        %v487 = vadd.f32 %v387, %v479
        %v488 = vadd.f32 %v392, %v484
        %v489 = vld [vmem:[#allocation2 + $0x3] sm:$0xff]
        %v490 = vld [vmem:[#allocation2 + $0xb] sm:$0xff]
        %s491 = scalar_lea.vmem [#allocation6], 192
        %v492 = vld [vmem:[%s491] sm:$0xff]
        %v493 = vld [vmem:[%s491 + $0x8] sm:$0xff]
        %v494 = vld [vmem:[%s491 + $0x10] sm:$0xff]
        %v495 = vld [vmem:[%s491 + $0x18] sm:$0xff]
        %v496 = vld [vmem:[%s491 + $0x20] sm:$0xff]
        %v497 = vld [vmem:[%s491 + $0x28] sm:$0xff]
        %v498 = vld [vmem:[%s491 + $0x30] sm:$0xff]
        %v499 = vld [vmem:[%s491 + $0x38] sm:$0xff]
        %v501 = vsel %vm204, %v489, 0
        %v504 = vsel %vm204, %v490, 0
        %506 = vmatprep.subr.mxu0 0.0
        %507 = vmatpush1.msra.mxu0 %v492
        %508 = vmatprep.subr.mxu0 0.0
        %509 = vmatpush1.msra.mxu0 %v493
        %510 = vmatprep.subr.mxu0 0.0
        %511 = vmatpush1.msra.mxu0 %v494
        %512 = vmatprep.subr.mxu0 0.0
        %513 = vmatpush1.msra.mxu0 %v495
        %514 = vmatprep.subr.mxu0 0.0
        %515 = vmatpush1.msra.mxu0 %v496
        %516 = vmatprep.subr.mxu0 0.0
        %517 = vmatpush1.msra.mxu0 %v497
        %518 = vmatprep.subr.mxu0 0.0
        %519 = vmatpush1.msra.mxu0 %v498
        %520 = vmatprep.subr.mxu0 0.0
        %521 = vmatpush1.msra.mxu0 %v499
        %522 = vmatprep.subr.mxu0 0.0
        %523 = vmatpush1.msra.mxu0 0.0
        %524 = vmatprep.subr.mxu0 0.0
        %525 = vmatpush1.msra.mxu0 0.0
        %526 = vmatprep.subr.mxu0 0.0
        %527 = vmatpush1.msra.mxu0 0.0
        %528 = vmatprep.subr.mxu0 0.0
        %529 = vmatpush1.msra.mxu0 0.0
        %530 = vmatprep.subr.mxu0 0.0
        %531 = vmatpush1.msra.mxu0 0.0
        %532 = vmatprep.subr.mxu0 0.0
        %533 = vmatpush1.msra.mxu0 0.0
        %534 = vmatprep.subr.mxu0 0.0
        %535 = vmatpush1.msra.mxu0 0.0
        %536 = vmatprep.subr.mxu0 0.0
        %537 = vmatpush1.msra.mxu0 0.0
        %538 = vmatprep.subr.mxu0 0.0
        %539 = vmatpush1.msra.mxu0 0.0
        %540 = vmatprep.subr.mxu0 0.0
        %541 = vmatpush1.msra.mxu0 0.0
        %542 = vmatprep.subr.mxu0 0.0
        %543 = vmatpush1.msra.mxu0 0.0
        %544 = vmatprep.subr.mxu0 0.0
        %545 = vmatpush1.msra.mxu0 0.0
        %546 = vmatprep.subr.mxu0 0.0
        %547 = vmatpush1.msra.mxu0 0.0
        %548 = vmatprep.subr.mxu0 0.0
        %549 = vmatpush1.msra.mxu0 0.0
        %550 = vmatprep.subr.mxu0 0.0
        %551 = vmatpush1.msra.mxu0 0.0
        %552 = vmatprep.subr.mxu0 0.0
        %553 = vmatpush1.msra.mxu0 0.0
        %554 = vmatprep.subr.mxu0 0.0
        %555 = vmatpush1.msra.mxu0 0.0
        %556 = vmatprep.subr.mxu0 0.0
        %557 = vmatpush1.msra.mxu0 0.0
        %558 = vmatprep.subr.mxu0 0.0
        %559 = vmatpush1.msra.mxu0 0.0
        %560 = vmatprep.subr.mxu0 0.0
        %561 = vmatpush1.msra.mxu0 0.0
        %562 = vmatprep.subr.mxu0 0.0
        %563 = vmatpush1.msra.mxu0 0.0
        %564 = vmatprep.subr.mxu0 0.0
        %565 = vmatpush1.msra.mxu0 0.0
        %566 = vmatprep.subr.mxu0 0.0
        %567 = vmatpush1.msra.mxu0 0.0
        %568 = vmatprep.subr.mxu0 0.0
        %569 = vmatpush1.msra.mxu0 0.0
        %570 = vmatprep.mubr.f32.mxu0 0.0
        %571 = vmatmul.mubr.f32.gmra.mrb[0].mxu0 %v501
        %v572 = vpop.f32.mrb[0].mxu0
        %v573 = vadd.f32 0.0, %v572
        %v574 = vpop.f32.mrb[0].mxu0
        %575 = vmatprep.mubr.f32.mxu0 0.0
        %576 = vmatmul.mubr.f32.gmra.mrb[0].mxu0 %v504
        %v577 = vpop.f32.mrb[0].mxu0
        %v578 = vadd.f32 0.0, %v577
        %v579 = vpop.f32.mrb[0].mxu0
        %580 = vdwg.mxu0
        %v581 = vadd.f32 %v487, %v573
        %v582 = vadd.f32 %v488, %v578
        %v583 = vld [vmem:[#allocation2 + $0x4] sm:$0xff]
        %v584 = vld [vmem:[#allocation2 + $0xc] sm:$0xff]
        %s585 = scalar_lea.vmem [#allocation6], 256
        %v586 = vld [vmem:[%s585] sm:$0xff]
        %v587 = vld [vmem:[%s585 + $0x8] sm:$0xff]
        %v588 = vld [vmem:[%s585 + $0x10] sm:$0xff]
        %v589 = vld [vmem:[%s585 + $0x18] sm:$0xff]
        %v590 = vld [vmem:[%s585 + $0x20] sm:$0xff]
        %v591 = vld [vmem:[%s585 + $0x28] sm:$0xff]
        %v592 = vld [vmem:[%s585 + $0x30] sm:$0xff]
        %v593 = vld [vmem:[%s585 + $0x38] sm:$0xff]
        %v595 = vsel %vm204, %v583, 0
        %v598 = vsel %vm204, %v584, 0
        %600 = vmatprep.subr.mxu0 0.0
        %601 = vmatpush1.msra.mxu0 %v586
        %602 = vmatprep.subr.mxu0 0.0
        %603 = vmatpush1.msra.mxu0 %v587
        %604 = vmatprep.subr.mxu0 0.0
        %605 = vmatpush1.msra.mxu0 %v588
        %606 = vmatprep.subr.mxu0 0.0
        %607 = vmatpush1.msra.mxu0 %v589
        %608 = vmatprep.subr.mxu0 0.0
        %609 = vmatpush1.msra.mxu0 %v590
        %610 = vmatprep.subr.mxu0 0.0
        %611 = vmatpush1.msra.mxu0 %v591
        %612 = vmatprep.subr.mxu0 0.0
        %613 = vmatpush1.msra.mxu0 %v592
        %614 = vmatprep.subr.mxu0 0.0
        %615 = vmatpush1.msra.mxu0 %v593
        %616 = vmatprep.subr.mxu0 0.0
        %617 = vmatpush1.msra.mxu0 0.0
        %618 = vmatprep.subr.mxu0 0.0
        %619 = vmatpush1.msra.mxu0 0.0
        %620 = vmatprep.subr.mxu0 0.0
        %621 = vmatpush1.msra.mxu0 0.0
        %622 = vmatprep.subr.mxu0 0.0
        %623 = vmatpush1.msra.mxu0 0.0
        %624 = vmatprep.subr.mxu0 0.0
        %625 = vmatpush1.msra.mxu0 0.0
        %626 = vmatprep.subr.mxu0 0.0
        %627 = vmatpush1.msra.mxu0 0.0
        %628 = vmatprep.subr.mxu0 0.0
        %629 = vmatpush1.msra.mxu0 0.0
        %630 = vmatprep.subr.mxu0 0.0
        %631 = vmatpush1.msra.mxu0 0.0
        %632 = vmatprep.subr.mxu0 0.0
        %633 = vmatpush1.msra.mxu0 0.0
        %634 = vmatprep.subr.mxu0 0.0
        %635 = vmatpush1.msra.mxu0 0.0
        %636 = vmatprep.subr.mxu0 0.0
        %637 = vmatpush1.msra.mxu0 0.0
        %638 = vmatprep.subr.mxu0 0.0
        %639 = vmatpush1.msra.mxu0 0.0
        %640 = vmatprep.subr.mxu0 0.0
        %641 = vmatpush1.msra.mxu0 0.0
        %642 = vmatprep.subr.mxu0 0.0
        %643 = vmatpush1.msra.mxu0 0.0
        %644 = vmatprep.subr.mxu0 0.0
        %645 = vmatpush1.msra.mxu0 0.0
        %646 = vmatprep.subr.mxu0 0.0
        %647 = vmatpush1.msra.mxu0 0.0
        %648 = vmatprep.subr.mxu0 0.0
        %649 = vmatpush1.msra.mxu0 0.0
        %650 = vmatprep.subr.mxu0 0.0
        %651 = vmatpush1.msra.mxu0 0.0
        %652 = vmatprep.subr.mxu0 0.0
        %653 = vmatpush1.msra.mxu0 0.0
        %654 = vmatprep.subr.mxu0 0.0
        %655 = vmatpush1.msra.mxu0 0.0
        %656 = vmatprep.subr.mxu0 0.0
        %657 = vmatpush1.msra.mxu0 0.0
        %658 = vmatprep.subr.mxu0 0.0
        %659 = vmatpush1.msra.mxu0 0.0
        %660 = vmatprep.subr.mxu0 0.0
        %661 = vmatpush1.msra.mxu0 0.0
        %662 = vmatprep.subr.mxu0 0.0
        %663 = vmatpush1.msra.mxu0 0.0
        %664 = vmatprep.mubr.f32.mxu0 0.0
        %665 = vmatmul.mubr.f32.gmra.mrb[0].mxu0 %v595
        %v666 = vpop.f32.mrb[0].mxu0
        %v667 = vadd.f32 0.0, %v666
        %v668 = vpop.f32.mrb[0].mxu0
        %669 = vmatprep.mubr.f32.mxu0 0.0
        %670 = vmatmul.mubr.f32.gmra.mrb[0].mxu0 %v598
        %v671 = vpop.f32.mrb[0].mxu0
        %v672 = vadd.f32 0.0, %v671
        %v673 = vpop.f32.mrb[0].mxu0
        %674 = vdwg.mxu0
        %v675 = vadd.f32 %v581, %v667
        %v676 = vadd.f32 %v582, %v672
        %v677 = vld [vmem:[#allocation2 + $0x5] sm:$0xff]
        %v678 = vld [vmem:[#allocation2 + $0xd] sm:$0xff]
        %s679 = scalar_lea.vmem [#allocation6], 320
        %v680 = vld [vmem:[%s679] sm:$0xff]
        %v681 = vld [vmem:[%s679 + $0x8] sm:$0xff]
        %v682 = vld [vmem:[%s679 + $0x10] sm:$0xff]
        %v683 = vld [vmem:[%s679 + $0x18] sm:$0xff]
        %v684 = vld [vmem:[%s679 + $0x20] sm:$0xff]
        %v685 = vld [vmem:[%s679 + $0x28] sm:$0xff]
        %v686 = vld [vmem:[%s679 + $0x30] sm:$0xff]
        %v687 = vld [vmem:[%s679 + $0x38] sm:$0xff]
        %v689 = vsel %vm204, %v677, 0
        %v692 = vsel %vm204, %v678, 0
        %694 = vmatprep.subr.mxu0 0.0
        %695 = vmatpush1.msra.mxu0 %v680
        %696 = vmatprep.subr.mxu0 0.0
        %697 = vmatpush1.msra.mxu0 %v681
        %698 = vmatprep.subr.mxu0 0.0
        %699 = vmatpush1.msra.mxu0 %v682
        %700 = vmatprep.subr.mxu0 0.0
        %701 = vmatpush1.msra.mxu0 %v683
        %702 = vmatprep.subr.mxu0 0.0
        %703 = vmatpush1.msra.mxu0 %v684
        %704 = vmatprep.subr.mxu0 0.0
        %705 = vmatpush1.msra.mxu0 %v685
        %706 = vmatprep.subr.mxu0 0.0
        %707 = vmatpush1.msra.mxu0 %v686
        %708 = vmatprep.subr.mxu0 0.0
        %709 = vmatpush1.msra.mxu0 %v687
        %710 = vmatprep.subr.mxu0 0.0
        %711 = vmatpush1.msra.mxu0 0.0
        %712 = vmatprep.subr.mxu0 0.0
        %713 = vmatpush1.msra.mxu0 0.0
        %714 = vmatprep.subr.mxu0 0.0
        %715 = vmatpush1.msra.mxu0 0.0
        %716 = vmatprep.subr.mxu0 0.0
        %717 = vmatpush1.msra.mxu0 0.0
        %718 = vmatprep.subr.mxu0 0.0
        %719 = vmatpush1.msra.mxu0 0.0
        %720 = vmatprep.subr.mxu0 0.0
        %721 = vmatpush1.msra.mxu0 0.0
        %722 = vmatprep.subr.mxu0 0.0
        %723 = vmatpush1.msra.mxu0 0.0
        %724 = vmatprep.subr.mxu0 0.0
        %725 = vmatpush1.msra.mxu0 0.0
        %726 = vmatprep.subr.mxu0 0.0
        %727 = vmatpush1.msra.mxu0 0.0
        %728 = vmatprep.subr.mxu0 0.0
        %729 = vmatpush1.msra.mxu0 0.0
        %730 = vmatprep.subr.mxu0 0.0
        %731 = vmatpush1.msra.mxu0 0.0
        %732 = vmatprep.subr.mxu0 0.0
        %733 = vmatpush1.msra.mxu0 0.0
        %734 = vmatprep.subr.mxu0 0.0
        %735 = vmatpush1.msra.mxu0 0.0
        %736 = vmatprep.subr.mxu0 0.0
        %737 = vmatpush1.msra.mxu0 0.0
        %738 = vmatprep.subr.mxu0 0.0
        %739 = vmatpush1.msra.mxu0 0.0
        %740 = vmatprep.subr.mxu0 0.0
        %741 = vmatpush1.msra.mxu0 0.0
        %742 = vmatprep.subr.mxu0 0.0
        %743 = vmatpush1.msra.mxu0 0.0
        %744 = vmatprep.subr.mxu0 0.0
        %745 = vmatpush1.msra.mxu0 0.0
        %746 = vmatprep.subr.mxu0 0.0
        %747 = vmatpush1.msra.mxu0 0.0
        %748 = vmatprep.subr.mxu0 0.0
        %749 = vmatpush1.msra.mxu0 0.0
        %750 = vmatprep.subr.mxu0 0.0
        %751 = vmatpush1.msra.mxu0 0.0
        %752 = vmatprep.subr.mxu0 0.0
        %753 = vmatpush1.msra.mxu0 0.0
        %754 = vmatprep.subr.mxu0 0.0
        %755 = vmatpush1.msra.mxu0 0.0
        %756 = vmatprep.subr.mxu0 0.0
        %757 = vmatpush1.msra.mxu0 0.0
        %758 = vmatprep.mubr.f32.mxu0 0.0
        %759 = vmatmul.mubr.f32.gmra.mrb[0].mxu0 %v689
        %v760 = vpop.f32.mrb[0].mxu0
        %v761 = vadd.f32 0.0, %v760
        %v762 = vpop.f32.mrb[0].mxu0
        %763 = vmatprep.mubr.f32.mxu0 0.0
        %764 = vmatmul.mubr.f32.gmra.mrb[0].mxu0 %v692
        %v765 = vpop.f32.mrb[0].mxu0
        %v766 = vadd.f32 0.0, %v765
        %v767 = vpop.f32.mrb[0].mxu0
        %768 = vdwg.mxu0
        %v769 = vadd.f32 %v675, %v761
        %v770 = vadd.f32 %v676, %v766
        %v771 = vld [vmem:[#allocation2 + $0x6] sm:$0xff]
        %v772 = vld [vmem:[#allocation2 + $0xe] sm:$0xff]
        %s773 = scalar_lea.vmem [#allocation6], 384
        %v774 = vld [vmem:[%s773] sm:$0xff]
        %v775 = vld [vmem:[%s773 + $0x8] sm:$0xff]
        %v776 = vld [vmem:[%s773 + $0x10] sm:$0xff]
        %v777 = vld [vmem:[%s773 + $0x18] sm:$0xff]
        %v778 = vld [vmem:[%s773 + $0x20] sm:$0xff]
        %v779 = vld [vmem:[%s773 + $0x28] sm:$0xff]
        %v780 = vld [vmem:[%s773 + $0x30] sm:$0xff]
        %v781 = vld [vmem:[%s773 + $0x38] sm:$0xff]
        %v783 = vsel %vm204, %v771, 0
        %v786 = vsel %vm204, %v772, 0
        %788 = vmatprep.subr.mxu0 0.0
        %789 = vmatpush1.msra.mxu0 %v774
        %790 = vmatprep.subr.mxu0 0.0
        %791 = vmatpush1.msra.mxu0 %v775
        %792 = vmatprep.subr.mxu0 0.0
        %793 = vmatpush1.msra.mxu0 %v776
        %794 = vmatprep.subr.mxu0 0.0
        %795 = vmatpush1.msra.mxu0 %v777
        %796 = vmatprep.subr.mxu0 0.0
        %797 = vmatpush1.msra.mxu0 %v778
        %798 = vmatprep.subr.mxu0 0.0
        %799 = vmatpush1.msra.mxu0 %v779
        %800 = vmatprep.subr.mxu0 0.0
        %801 = vmatpush1.msra.mxu0 %v780
        %802 = vmatprep.subr.mxu0 0.0
        %803 = vmatpush1.msra.mxu0 %v781
        %804 = vmatprep.subr.mxu0 0.0
        %805 = vmatpush1.msra.mxu0 0.0
        %806 = vmatprep.subr.mxu0 0.0
        %807 = vmatpush1.msra.mxu0 0.0
        %808 = vmatprep.subr.mxu0 0.0
        %809 = vmatpush1.msra.mxu0 0.0
        %810 = vmatprep.subr.mxu0 0.0
        %811 = vmatpush1.msra.mxu0 0.0
        %812 = vmatprep.subr.mxu0 0.0
        %813 = vmatpush1.msra.mxu0 0.0
        %814 = vmatprep.subr.mxu0 0.0
        %815 = vmatpush1.msra.mxu0 0.0
        %816 = vmatprep.subr.mxu0 0.0
        %817 = vmatpush1.msra.mxu0 0.0
        %818 = vmatprep.subr.mxu0 0.0
        %819 = vmatpush1.msra.mxu0 0.0
        %820 = vmatprep.subr.mxu0 0.0
        %821 = vmatpush1.msra.mxu0 0.0
        %822 = vmatprep.subr.mxu0 0.0
        %823 = vmatpush1.msra.mxu0 0.0
        %824 = vmatprep.subr.mxu0 0.0
        %825 = vmatpush1.msra.mxu0 0.0
        %826 = vmatprep.subr.mxu0 0.0
        %827 = vmatpush1.msra.mxu0 0.0
        %828 = vmatprep.subr.mxu0 0.0
        %829 = vmatpush1.msra.mxu0 0.0
        %830 = vmatprep.subr.mxu0 0.0
        %831 = vmatpush1.msra.mxu0 0.0
        %832 = vmatprep.subr.mxu0 0.0
        %833 = vmatpush1.msra.mxu0 0.0
        %834 = vmatprep.subr.mxu0 0.0
        %835 = vmatpush1.msra.mxu0 0.0
        %836 = vmatprep.subr.mxu0 0.0
        %837 = vmatpush1.msra.mxu0 0.0
        %838 = vmatprep.subr.mxu0 0.0
        %839 = vmatpush1.msra.mxu0 0.0
        %840 = vmatprep.subr.mxu0 0.0
        %841 = vmatpush1.msra.mxu0 0.0
        %842 = vmatprep.subr.mxu0 0.0
        %843 = vmatpush1.msra.mxu0 0.0
        %844 = vmatprep.subr.mxu0 0.0
        %845 = vmatpush1.msra.mxu0 0.0
        %846 = vmatprep.subr.mxu0 0.0
        %847 = vmatpush1.msra.mxu0 0.0
        %848 = vmatprep.subr.mxu0 0.0
        %849 = vmatpush1.msra.mxu0 0.0
        %850 = vmatprep.subr.mxu0 0.0
        %851 = vmatpush1.msra.mxu0 0.0
        %852 = vmatprep.mubr.f32.mxu0 0.0
        %853 = vmatmul.mubr.f32.gmra.mrb[0].mxu0 %v783
        %v854 = vpop.f32.mrb[0].mxu0
        %v855 = vadd.f32 0.0, %v854
        %v856 = vpop.f32.mrb[0].mxu0
        %857 = vmatprep.mubr.f32.mxu0 0.0
        %858 = vmatmul.mubr.f32.gmra.mrb[0].mxu0 %v786
        %v859 = vpop.f32.mrb[0].mxu0
        %v860 = vadd.f32 0.0, %v859
        %v861 = vpop.f32.mrb[0].mxu0
        %862 = vdwg.mxu0
        %v863 = vadd.f32 %v769, %v855
        %v864 = vadd.f32 %v770, %v860
        %v865 = vld [vmem:[#allocation2 + $0x7] sm:$0xff]
        %v866 = vld [vmem:[#allocation2 + $0xf] sm:$0xff]
        %s867 = scalar_lea.vmem [#allocation6], 448
        %v868 = vld [vmem:[%s867] sm:$0xff]
        %v869 = vld [vmem:[%s867 + $0x8] sm:$0xff]
        %v870 = vld [vmem:[%s867 + $0x10] sm:$0xff]
        %v871 = vld [vmem:[%s867 + $0x18] sm:$0xff]
        %v872 = vld [vmem:[%s867 + $0x20] sm:$0xff]
        %v873 = vld [vmem:[%s867 + $0x28] sm:$0xff]
        %v874 = vld [vmem:[%s867 + $0x30] sm:$0xff]
        %v875 = vld [vmem:[%s867 + $0x38] sm:$0xff]
        %v877 = vsel %vm204, %v865, 0
        %v880 = vsel %vm204, %v866, 0
        %882 = vmatprep.subr.mxu0 0.0
        %883 = vmatpush1.msra.mxu0 %v868
        %884 = vmatprep.subr.mxu0 0.0
        %885 = vmatpush1.msra.mxu0 %v869
        %886 = vmatprep.subr.mxu0 0.0
        %887 = vmatpush1.msra.mxu0 %v870
        %888 = vmatprep.subr.mxu0 0.0
        %889 = vmatpush1.msra.mxu0 %v871
        %890 = vmatprep.subr.mxu0 0.0
        %891 = vmatpush1.msra.mxu0 %v872
        %892 = vmatprep.subr.mxu0 0.0
        %893 = vmatpush1.msra.mxu0 %v873
        %894 = vmatprep.subr.mxu0 0.0
        %895 = vmatpush1.msra.mxu0 %v874
        %896 = vmatprep.subr.mxu0 0.0
        %897 = vmatpush1.msra.mxu0 %v875
        %898 = vmatprep.subr.mxu0 0.0
        %899 = vmatpush1.msra.mxu0 0.0
        %900 = vmatprep.subr.mxu0 0.0
        %901 = vmatpush1.msra.mxu0 0.0
        %902 = vmatprep.subr.mxu0 0.0
        %903 = vmatpush1.msra.mxu0 0.0
        %904 = vmatprep.subr.mxu0 0.0
        %905 = vmatpush1.msra.mxu0 0.0
        %906 = vmatprep.subr.mxu0 0.0
        %907 = vmatpush1.msra.mxu0 0.0
        %908 = vmatprep.subr.mxu0 0.0
        %909 = vmatpush1.msra.mxu0 0.0
        %910 = vmatprep.subr.mxu0 0.0
        %911 = vmatpush1.msra.mxu0 0.0
        %912 = vmatprep.subr.mxu0 0.0
        %913 = vmatpush1.msra.mxu0 0.0
        %914 = vmatprep.subr.mxu0 0.0
        %915 = vmatpush1.msra.mxu0 0.0
        %916 = vmatprep.subr.mxu0 0.0
        %917 = vmatpush1.msra.mxu0 0.0
        %918 = vmatprep.subr.mxu0 0.0
        %919 = vmatpush1.msra.mxu0 0.0
        %920 = vmatprep.subr.mxu0 0.0
        %921 = vmatpush1.msra.mxu0 0.0
        %922 = vmatprep.subr.mxu0 0.0
        %923 = vmatpush1.msra.mxu0 0.0
        %924 = vmatprep.subr.mxu0 0.0
        %925 = vmatpush1.msra.mxu0 0.0
        %926 = vmatprep.subr.mxu0 0.0
        %927 = vmatpush1.msra.mxu0 0.0
        %928 = vmatprep.subr.mxu0 0.0
        %929 = vmatpush1.msra.mxu0 0.0
        %930 = vmatprep.subr.mxu0 0.0
        %931 = vmatpush1.msra.mxu0 0.0
        %932 = vmatprep.subr.mxu0 0.0
        %933 = vmatpush1.msra.mxu0 0.0
        %934 = vmatprep.subr.mxu0 0.0
        %935 = vmatpush1.msra.mxu0 0.0
        %936 = vmatprep.subr.mxu0 0.0
        %937 = vmatpush1.msra.mxu0 0.0
        %938 = vmatprep.subr.mxu0 0.0
        %939 = vmatpush1.msra.mxu0 0.0
        %940 = vmatprep.subr.mxu0 0.0
        %941 = vmatpush1.msra.mxu0 0.0
        %942 = vmatprep.subr.mxu0 0.0
        %943 = vmatpush1.msra.mxu0 0.0
        %944 = vmatprep.subr.mxu0 0.0
        %945 = vmatpush1.msra.mxu0 0.0
        %946 = vmatprep.mubr.f32.mxu0 0.0
        %947 = vmatmul.mubr.f32.gmra.mrb[0].mxu0 %v877
        %v948 = vpop.f32.mrb[0].mxu0
        %v949 = vadd.f32 0.0, %v948
        %v950 = vpop.f32.mrb[0].mxu0
        %951 = vmatprep.mubr.f32.mxu0 0.0
        %952 = vmatmul.mubr.f32.gmra.mrb[0].mxu0 %v880
        %v953 = vpop.f32.mrb[0].mxu0
        %v954 = vadd.f32 0.0, %v953
        %v955 = vpop.f32.mrb[0].mxu0
        %956 = vdwg.mxu0
        %v957 = vadd.f32 %v863, %v949
        %v958 = vadd.f32 %v864, %v954
        %v959 = vld [vmem:[#allocation2 + $0x8] sm:$0xff]
        %v960 = vld [vmem:[#allocation2 + $0x10] sm:$0xff]
        %s961 = scalar_lea.vmem [#allocation6], 512
        %v962 = vld [vmem:[%s961] sm:$0xff]
        %v963 = vld [vmem:[%s961 + $0x8] sm:$0xff]
        %v964 = vld [vmem:[%s961 + $0x10] sm:$0xff]
        %v965 = vld [vmem:[%s961 + $0x18] sm:$0xff]
        %v966 = vld [vmem:[%s961 + $0x20] sm:$0xff]
        %v967 = vld [vmem:[%s961 + $0x28] sm:$0xff]
        %v968 = vld [vmem:[%s961 + $0x30] sm:$0xff]
        %v969 = vld [vmem:[%s961 + $0x38] sm:$0xff]
        %v971 = vsel %vm204, %v959, 0
        %v974 = vsel %vm204, %v960, 0
        %976 = vmatprep.subr.mxu0 0.0
        %977 = vmatpush1.msra.mxu0 %v962
        %978 = vmatprep.subr.mxu0 0.0
        %979 = vmatpush1.msra.mxu0 %v963
        %980 = vmatprep.subr.mxu0 0.0
        %981 = vmatpush1.msra.mxu0 %v964
        %982 = vmatprep.subr.mxu0 0.0
        %983 = vmatpush1.msra.mxu0 %v965
        %984 = vmatprep.subr.mxu0 0.0
        %985 = vmatpush1.msra.mxu0 %v966
        %986 = vmatprep.subr.mxu0 0.0
        %987 = vmatpush1.msra.mxu0 %v967
        %988 = vmatprep.subr.mxu0 0.0
        %989 = vmatpush1.msra.mxu0 %v968
        %990 = vmatprep.subr.mxu0 0.0
        %991 = vmatpush1.msra.mxu0 %v969
        %992 = vmatprep.subr.mxu0 0.0
        %993 = vmatpush1.msra.mxu0 0.0
        %994 = vmatprep.subr.mxu0 0.0
        %995 = vmatpush1.msra.mxu0 0.0
        %996 = vmatprep.subr.mxu0 0.0
        %997 = vmatpush1.msra.mxu0 0.0
        %998 = vmatprep.subr.mxu0 0.0
        %999 = vmatpush1.msra.mxu0 0.0
        %1000 = vmatprep.subr.mxu0 0.0
        %1001 = vmatpush1.msra.mxu0 0.0
        %1002 = vmatprep.subr.mxu0 0.0
        %1003 = vmatpush1.msra.mxu0 0.0
        %1004 = vmatprep.subr.mxu0 0.0
        %1005 = vmatpush1.msra.mxu0 0.0
        %1006 = vmatprep.subr.mxu0 0.0
        %1007 = vmatpush1.msra.mxu0 0.0
        %1008 = vmatprep.subr.mxu0 0.0
        %1009 = vmatpush1.msra.mxu0 0.0
        %1010 = vmatprep.subr.mxu0 0.0
        %1011 = vmatpush1.msra.mxu0 0.0
        %1012 = vmatprep.subr.mxu0 0.0
        %1013 = vmatpush1.msra.mxu0 0.0
        %1014 = vmatprep.subr.mxu0 0.0
        %1015 = vmatpush1.msra.mxu0 0.0
        %1016 = vmatprep.subr.mxu0 0.0
        %1017 = vmatpush1.msra.mxu0 0.0
        %1018 = vmatprep.subr.mxu0 0.0
        %1019 = vmatpush1.msra.mxu0 0.0
        %1020 = vmatprep.subr.mxu0 0.0
        %1021 = vmatpush1.msra.mxu0 0.0
        %1022 = vmatprep.subr.mxu0 0.0
        %1023 = vmatpush1.msra.mxu0 0.0
        %1024 = vmatprep.subr.mxu0 0.0
        %1025 = vmatpush1.msra.mxu0 0.0
        %1026 = vmatprep.subr.mxu0 0.0
        %1027 = vmatpush1.msra.mxu0 0.0
        %1028 = vmatprep.subr.mxu0 0.0
        %1029 = vmatpush1.msra.mxu0 0.0
        %1030 = vmatprep.subr.mxu0 0.0
        %1031 = vmatpush1.msra.mxu0 0.0
        %1032 = vmatprep.subr.mxu0 0.0
        %1033 = vmatpush1.msra.mxu0 0.0
        %1034 = vmatprep.subr.mxu0 0.0
        %1035 = vmatpush1.msra.mxu0 0.0
        %1036 = vmatprep.subr.mxu0 0.0
        %1037 = vmatpush1.msra.mxu0 0.0
        %1038 = vmatprep.subr.mxu0 0.0
        %1039 = vmatpush1.msra.mxu0 0.0
        %1040 = vmatprep.mubr.f32.mxu0 0.0
        %1041 = vmatmul.mubr.f32.gmra.mrb[0].mxu0 %v971
        %v1042 = vpop.f32.mrb[0].mxu0
        %v1043 = vadd.f32 0.0, %v1042
        %v1044 = vpop.f32.mrb[0].mxu0
        %1045 = vmatprep.mubr.f32.mxu0 0.0
        %1046 = vmatmul.mubr.f32.gmra.mrb[0].mxu0 %v974
        %v1047 = vpop.f32.mrb[0].mxu0
        %v1048 = vadd.f32 0.0, %v1047
        %v1049 = vpop.f32.mrb[0].mxu0
        %1050 = vdwg.mxu0
        %v1051 = vadd.f32 %v957, %v1043
        %v1052 = vadd.f32 %v958, %v1048
        %v1053 = vld [vmem:[%s2] sm:$0x1]
        %v1055 = vlaneseq
        %v1056 = vshrl.u32 %v1055, 7
        %v1057 = vsub.s32 0, %v1056
        %v1058 = vrot.slane %v1053, %v1057
        %v1060 = vadd.f32 %v1051, %v1058
        %v1061 = vadd.f32 %v1052, %v1058
        %1062 = vst.msk [vmem:[%s203] sm:$0xff] %vm204, %v1060
        %1063 = vst.msk [vmem:[%s203 + $0x8] sm:$0xff] %vm204, %v1061
        %s1064 = sand.u32 %s97, 1
        %s1065 = scalar_lea.sflag [#allocation5], %s1064
        %s1066 = sand.u32 %s97, 1
        %s1067 = smul.addr %s1066, 16
        %s1068 = scalar_lea.vmem [#allocation8], %s1067
        // Predicated region
        $region41: #{tpu_custom_call.1} parent=31 // pred_check
          %p1069 = pneg %p107
        $region42: #{tpu_custom_call.1} parent=31 // pred_check_branch
          %1071 = sbr.rel (%p1069) target = $region44
        $region43: #{tpu_custom_call.1} parent=31 // pred_region
          %s1073 = ssub.s32 256, 256
          %1074 = vsyncadd %s1065, %s1073
          %s1075 = smul.addr %s21, 2
          %s1076 = smul.addr %s1075, 128
          %s1077 = scalar_lea.hbm %s3, %s1076
          %s1078 = sshll.u32 %s1068, 4
          %s1079 = int_to_ptr.vmem [resolvable:$true] %s1078
          %1084 = dma.vmem_to_hbm [thread:$0]  %s1079, 256, %s1077, %s1065, 128, 128, 8
        $region44: #{tpu_custom_call.1} parent=31 // pred_fallthru
          _
      $region32: #{tpu_custom_call.1} parent=5 // pred_fallthru
        _
      %p1085 = scmp.le.s32.totalorder 2, %s16
      // Predicated region
      $region45: #{tpu_custom_call.1} parent=5 // pred_check
        %p1086 = pneg %p1085
      $region46: #{tpu_custom_call.1} parent=5 // pred_check_branch
        %1088 = sbr.rel (%p1086) target = $region48
      $region47: #{tpu_custom_call.1} parent=5 // pred_region
        %s1089 = ssub.s32 %s16, 2
        // Predicated region
        $region49: #{tpu_custom_call.1} parent=47 // pred_check
          %p1090 = pneg %p113
        $region50: #{tpu_custom_call.1} parent=47 // pred_check_branch
          %1092 = sbr.rel (%p1090) target = $region52
        $region51: #{tpu_custom_call.1} parent=47 // pred_region
          %s1093 = sand.u32 %s98, 1
          %s1094 = scalar_lea.sflag [#allocation5], %s1093
          %s1095 = sand.u32 %s98, 1
          %s1096 = smul.addr %s1095, 16
          %s1097 = scalar_lea.vmem [#allocation8], %s1096
          %1098 = dma.done %s1094, 256
        $region52: #{tpu_custom_call.1} parent=47 // pred_fallthru
          _
      $region48: #{tpu_custom_call.1} parent=5 // pred_fallthru
        _
    $region6: #{tpu_custom_call.1} parent=1 // loop_footer
      %s20 = sadd.s32 1, %s16
    $region7: #{tpu_custom_call.1} parent=1 // loop_footer_branch
      %15 = sbr.rel target = $region3
    $region8: #{tpu_custom_call.1} parent=1 // loop_exit
      _
    %1099 = vsyncpa [#allocation4], 1
    %s1100 = scalar_lea.sflag [#allocation4], 1
    %1101 = vsyncpa %s1100, 1
    %1102 = vsyncpa [#allocation7], 1
    %1103 = vsyncpa [#allocation5], 1
    %s1104 = scalar_lea.sflag [#allocation5], 1
    %1105 = vsyncpa %s1104, 1

</llo_original>
